<compile_context>
chip_gen: v5e
topology: v5e:2x2
jax: 0.10.0
libtpu: 0.0.40
codegen_flags: <defaults>
</compile_context>

<pallas_src>
import jax
import jax.numpy as jnp
from jax.experimental import pallas as pl
from jax.experimental.pallas import tpu as pltpu

LANE = 128                          # TPU lane width
DEFAULT_BLOCK_ROWS = 2048           # 2048 x 128 f32 = 1 MiB per array per step
VMEM_LIMIT_BYTES = 32 * 1024 * 1024  # explicit scoped-VMEM budget (~14 MiB used)


def _fuzzy_rule_kernel(w_ref, qw_ref, qn_ref, rps_ref, pa_ref, ti_ref, rpl_ref,
                       out_ref):
    # w_ref : SMEM f32[6]          (scalar-prefetched rule weights)
    # others: VMEM f32[tr, 128]    lane/sublane-dense tiles of each membership
    qw = qw_ref[...]
    qn = qn_ref[...]
    rps = rps_ref[...]
    pa = pa_ref[...]
    ti = ti_ref[...]
    rpl = rpl_ref[...]

    # Rule activations (min T-norm).
    r0 = jnp.minimum(qw, rps)
    r1 = jnp.minimum(qw, pa)
    r2 = jnp.minimum(qw, ti)
    r3 = jnp.minimum(qw, rpl)
    r4 = jnp.minimum(jnp.minimum(qn, rps), pa)
    # Rule 5: complement of the strongest PVC rule.
    r5 = 1.0 - jnp.maximum(
        jnp.maximum(jnp.maximum(r0, r1), jnp.maximum(r2, r3)), r4)

    # Weights stay on the scalar path (sregs).
    w0 = w_ref[0]
    w1 = w_ref[1]
    w2 = w_ref[2]
    w3 = w_ref[3]
    w4 = w_ref[4]
    w5 = w_ref[5]

    # rule_outputs = [1, 1, 1, 0.5, 0.5, 0]; the 0.5's fold into scalar weights.
    s012 = w0 * r0 + w1 * r1 + w2 * r2
    h3 = (0.5 * w3) * r3
    h4 = (0.5 * w4) * r4
    num = s012 + h3 + h4
    # denominator = wa0+..+wa5 + eps = num + 0.5*wa3 + 0.5*wa4 + wa5 + eps
    den = num + h3 + h4 + w5 * r5 + 1e-10
    # Exact divide: kernel is HBM-bound, divide is hidden under DMA.
    out_ref[...] = num / den


def _fuzzy_rule_xla(signals, rule_weights):
    """Fused-XLA fallback for small batches (kernel launch not worth it)."""
    qw, qn, rps, pa, ti, rpl = [s.astype(jnp.float32) for s in signals]
    w = rule_weights.astype(jnp.float32)
    r0 = jnp.minimum(qw, rps)
    r1 = jnp.minimum(qw, pa)
    r2 = jnp.minimum(qw, ti)
    r3 = jnp.minimum(qw, rpl)
    r4 = jnp.minimum(jnp.minimum(qn, rps), pa)
    r5 = 1.0 - jnp.maximum(
        jnp.maximum(jnp.maximum(r0, r1), jnp.maximum(r2, r3)), r4)
    num = w[0] * r0 + w[1] * r1 + w[2] * r2 + 0.5 * w[3] * r3 + 0.5 * w[4] * r4
    den = (w[0] * r0 + w[1] * r1 + w[2] * r2 + w[3] * r3 + w[4] * r4
           + w[5] * r5 + 1e-10)
    return (num / den).reshape(-1, 1)


def fuzzy_rule_base(mf_outputs, rule_weights, *,
                    block_rows=DEFAULT_BLOCK_ROWS, pallas_min_batch=0):
    """Pallas equivalent of FuzzyRuleBase.forward. Returns (B, 1) f32.

    pallas_min_batch: below this batch size dispatch to the fused XLA
    expression instead (launch + layout plumbing dominate at tiny B).  Kept at
    0 here so the demo exercises the Pallas path.
    """
    signals = (
        mf_outputs['qrs']['wide'],
        mf_outputs['qrs']['normal'],
        mf_outputs['rr_prev']['short'],
        mf_outputs['p_absent']['true'],
        mf_outputs['t_inv']['true'],
        mf_outputs['rr_post']['long'],
    )
    B = signals[0].shape[0]

    if B < pallas_min_batch:
        return _fuzzy_rule_xla(signals, rule_weights)

    # Lane-dense 2-D layout: (B,) -> (rows, 128).  Only pad to the next
    # multiple of 128 (and only when necessary) -- a free reshape otherwise.
    rows = pl.cdiv(B, LANE)
    Bp = rows * LANE

    def prep(x):
        x = x.astype(jnp.float32).reshape(-1)
        if Bp != B:
            # Zero padding is harmless: padded lanes get den = w5 + 1e-10 > 0,
            # num = 0, and are sliced off below anyway.
            x = jnp.pad(x, (0, Bp - B))
        return x.reshape(rows, LANE)

    tiles = [prep(s) for s in signals]

    # Block shape: either the full array (small B) or a VMEM-sized multiple of
    # 8 sublanes.  Pallas handles the partial last block when tr ∤ rows
    # (out-of-bounds reads are garbage but those output rows are discarded).
    tr = rows if rows <= block_rows else block_rows
    n_blocks = pl.cdiv(rows, tr)

    # index_map receives (grid_i, *scalar_prefetch_refs).
    block = pl.BlockSpec((tr, LANE), lambda i, w: (i, 0))

    out = pl.pallas_call(
        _fuzzy_rule_kernel,
        out_shape=jax.ShapeDtypeStruct((rows, LANE), jnp.float32),
        grid_spec=pltpu.PrefetchScalarGridSpec(
            num_scalar_prefetch=1,          # rule_weights -> SMEM
            grid=(n_blocks,),
            in_specs=[block] * 6,
            out_specs=block,
        ),
        compiler_params=pltpu.CompilerParams(
            # Independent tiles; on v7x core-level sharding could use
            # CORE_PARALLEL, kept portable here.
            dimension_semantics=("parallel",),
            vmem_limit_bytes=VMEM_LIMIT_BYTES,
        ),
    )(rule_weights.astype(jnp.float32), *tiles)

    # Lane-dense kernel output -> (B, 1); pure layout plumbing.
    flat = out.reshape(-1)
    if Bp != B:
        flat = flat[:B]
    return flat.reshape(B, 1)


def _reference(mf_outputs, rule_weights):
    """Pure-JAX reference mirroring the PyTorch forward."""
    qw = mf_outputs['qrs']['wide'].astype(jnp.float32)
    qn = mf_outputs['qrs']['normal'].astype(jnp.float32)
    rps = mf_outputs['rr_prev']['short'].astype(jnp.float32)
    pa = mf_outputs['p_absent']['true'].astype(jnp.float32)
    ti = mf_outputs['t_inv']['true'].astype(jnp.float32)
    rpl = mf_outputs['rr_post']['long'].astype(jnp.float32)
    r = jnp.stack(
        [
            jnp.minimum(qw, rps),
            jnp.minimum(qw, pa),
            jnp.minimum(qw, ti),
            jnp.minimum(qw, rpl),
            jnp.minimum(jnp.minimum(qn, rps), pa),
        ],
        axis=1,
    )
    r5 = 1.0 - jnp.max(r, axis=1, keepdims=True)
    ra = jnp.concatenate([r, r5], axis=1)
    wa = ra * rule_weights[None, :]
    ro = jnp.array([1.0, 1.0, 1.0, 0.5, 0.5, 0.0], dtype=jnp.float32)
    num = jnp.sum(wa * ro[None, :], axis=1, keepdims=True)
    den = jnp.sum(wa, axis=1, keepdims=True) + 1e-10
    return num / den


def _make_inputs(key, batch):
    keys = jax.random.split(key, 6)
    return {
        'qrs': {
            'wide': jax.random.uniform(keys[0], (batch,), dtype=jnp.float32),
            'normal': jax.random.uniform(keys[1], (batch,), dtype=jnp.float32),
        },
        'rr_prev': {'short': jax.random.uniform(keys[2], (batch,), dtype=jnp.float32)},
        'p_absent': {'true': jax.random.uniform(keys[3], (batch,), dtype=jnp.float32)},
        't_inv': {'true': jax.random.uniform(keys[4], (batch,), dtype=jnp.float32)},
        'rr_post': {'long': jax.random.uniform(keys[5], (batch,), dtype=jnp.float32)},
    }


if __name__ == "__main__":
    key = jax.random.PRNGKey(0)
    # Deterministic parameter init, same as the PyTorch __init__ constant.
    rule_weights = jnp.array([1.0, 1.0, 1.0, 0.6, 0.6, 0.2], dtype=jnp.float32)

    # Small shape consistent with the module (batch of per-sample memberships).
    B = 8
    mf_outputs = _make_inputs(key, B)
    out = jax.block_until_ready(fuzzy_rule_base(mf_outputs, rule_weights))
    ref = _reference(mf_outputs, rule_weights)
    assert out.shape == (B, 1)
    assert jnp.allclose(out, ref, rtol=5e-3, atol=5e-3)

    # Moderate batch: exercises the pad-to-128 path, single full-array block.
    B2 = 40000
    mf_outputs2 = _make_inputs(jax.random.PRNGKey(1), B2)
    out2 = jax.block_until_ready(fuzzy_rule_base(mf_outputs2, rule_weights))
    ref2 = _reference(mf_outputs2, rule_weights)
    assert out2.shape == (B2, 1)
    assert jnp.allclose(out2, ref2, rtol=5e-3, atol=5e-3)

    # Large batch: exercises the multi-block grid and the partial last block.
    B3 = 300000
    mf_outputs3 = _make_inputs(jax.random.PRNGKey(2), B3)
    out3 = jax.block_until_ready(fuzzy_rule_base(mf_outputs3, rule_weights))
    ref3 = _reference(mf_outputs3, rule_weights)
    assert out3.shape == (B3, 1)
    assert jnp.allclose(out3, ref3, rtol=5e-3, atol=5e-3)

    print("KERNEL_OK")
</pallas_src>

<mosaic_0001>
module attributes {stable_mosaic.version = 11 : i64} {
  func.func @_fuzzy_rule_kernel(%arg0: i32, %arg1: memref<6xf32, #tpu.memory_space<smem>>, %arg2: memref<1x128xf32, #tpu.memory_space<vmem>>, %arg3: memref<1x128xf32, #tpu.memory_space<vmem>>, %arg4: memref<1x128xf32, #tpu.memory_space<vmem>>, %arg5: memref<1x128xf32, #tpu.memory_space<vmem>>, %arg6: memref<1x128xf32, #tpu.memory_space<vmem>>, %arg7: memref<1x128xf32, #tpu.memory_space<vmem>>, %arg8: memref<1x128xf32, #tpu.memory_space<vmem>>) attributes {dimension_semantics = [#tpu.dimension_semantics<parallel>], iteration_bounds = array<i64: 1>, scalar_prefetch = 1 : i64, scratch_operands = 0 : i64, tpu.core_type = #tpu.core_type<tc>, window_params = [{transform_indices = @transform_0, window_bounds = array<i64: 1, 128>}, {transform_indices = @transform_1, window_bounds = array<i64: 1, 128>}, {transform_indices = @transform_2, window_bounds = array<i64: 1, 128>}, {transform_indices = @transform_3, window_bounds = array<i64: 1, 128>}, {transform_indices = @transform_4, window_bounds = array<i64: 1, 128>}, {transform_indices = @transform_5, window_bounds = array<i64: 1, 128>}, {transform_indices = @transform_6, window_bounds = array<i64: 1, 128>}]} {
    %c0 = arith.constant 0 : index
    %c0_0 = arith.constant 0 : index
    %0 = vector.load %arg2[%c0, %c0_0] : memref<1x128xf32, #tpu.memory_space<vmem>>, vector<1x128xf32>
    %c0_1 = arith.constant 0 : index
    %c0_2 = arith.constant 0 : index
    %1 = vector.load %arg3[%c0_1, %c0_2] : memref<1x128xf32, #tpu.memory_space<vmem>>, vector<1x128xf32>
    %c0_3 = arith.constant 0 : index
    %c0_4 = arith.constant 0 : index
    %2 = vector.load %arg4[%c0_3, %c0_4] : memref<1x128xf32, #tpu.memory_space<vmem>>, vector<1x128xf32>
    %c0_5 = arith.constant 0 : index
    %c0_6 = arith.constant 0 : index
    %3 = vector.load %arg5[%c0_5, %c0_6] : memref<1x128xf32, #tpu.memory_space<vmem>>, vector<1x128xf32>
    %c0_7 = arith.constant 0 : index
    %c0_8 = arith.constant 0 : index
    %4 = vector.load %arg6[%c0_7, %c0_8] : memref<1x128xf32, #tpu.memory_space<vmem>>, vector<1x128xf32>
    %c0_9 = arith.constant 0 : index
    %c0_10 = arith.constant 0 : index
    %5 = vector.load %arg7[%c0_9, %c0_10] : memref<1x128xf32, #tpu.memory_space<vmem>>, vector<1x128xf32>
    %6 = arith.minimumf %0, %2 : vector<1x128xf32>
    %7 = arith.minimumf %0, %3 : vector<1x128xf32>
    %8 = arith.minimumf %0, %4 : vector<1x128xf32>
    %9 = arith.minimumf %0, %5 : vector<1x128xf32>
    %10 = arith.minimumf %1, %2 : vector<1x128xf32>
    %11 = arith.minimumf %10, %3 : vector<1x128xf32>
    %12 = arith.maximumf %6, %7 : vector<1x128xf32>
    %13 = arith.maximumf %8, %9 : vector<1x128xf32>
    %14 = arith.maximumf %12, %13 : vector<1x128xf32>
    %15 = arith.maximumf %14, %11 : vector<1x128xf32>
    %cst = arith.constant 1.000000e+00 : f32
    %16 = vector.broadcast %cst : f32 to vector<1x128xf32>
    %17 = arith.subf %16, %15 : vector<1x128xf32>
    %c0_11 = arith.constant 0 : index
    %18 = memref.load %arg1[%c0_11] : memref<6xf32, #tpu.memory_space<smem>>
    %c1 = arith.constant 1 : index
    %19 = memref.load %arg1[%c1] : memref<6xf32, #tpu.memory_space<smem>>
    %c2 = arith.constant 2 : index
    %20 = memref.load %arg1[%c2] : memref<6xf32, #tpu.memory_space<smem>>
    %c3 = arith.constant 3 : index
    %21 = memref.load %arg1[%c3] : memref<6xf32, #tpu.memory_space<smem>>
    %c4 = arith.constant 4 : index
    %22 = memref.load %arg1[%c4] : memref<6xf32, #tpu.memory_space<smem>>
    %c5 = arith.constant 5 : index
    %23 = memref.load %arg1[%c5] : memref<6xf32, #tpu.memory_space<smem>>
    %24 = vector.broadcast %18 : f32 to vector<1x128xf32>
    %25 = arith.mulf %24, %6 : vector<1x128xf32>
    %26 = vector.broadcast %19 : f32 to vector<1x128xf32>
    %27 = arith.mulf %26, %7 : vector<1x128xf32>
    %28 = arith.addf %25, %27 : vector<1x128xf32>
    %29 = vector.broadcast %20 : f32 to vector<1x128xf32>
    %30 = arith.mulf %29, %8 : vector<1x128xf32>
    %31 = arith.addf %28, %30 : vector<1x128xf32>
    %cst_12 = arith.constant 5.000000e-01 : f32
    %32 = arith.mulf %cst_12, %21 : f32
    %33 = vector.broadcast %32 : f32 to vector<1x128xf32>
    %34 = arith.mulf %33, %9 : vector<1x128xf32>
    %cst_13 = arith.constant 5.000000e-01 : f32
    %35 = arith.mulf %cst_13, %22 : f32
    %36 = vector.broadcast %35 : f32 to vector<1x128xf32>
    %37 = arith.mulf %36, %11 : vector<1x128xf32>
    %38 = arith.addf %31, %34 : vector<1x128xf32>
    %39 = arith.addf %38, %37 : vector<1x128xf32>
    %40 = arith.addf %39, %34 : vector<1x128xf32>
    %41 = arith.addf %40, %37 : vector<1x128xf32>
    %42 = vector.broadcast %23 : f32 to vector<1x128xf32>
    %43 = arith.mulf %42, %17 : vector<1x128xf32>
    %44 = arith.addf %41, %43 : vector<1x128xf32>
    %cst_14 = arith.constant 1.000000e-10 : f32
    %45 = vector.broadcast %cst_14 : f32 to vector<1x128xf32>
    %46 = arith.addf %44, %45 : vector<1x128xf32>
    %47 = arith.divf %39, %46 : vector<1x128xf32>
    %c0_15 = arith.constant 0 : index
    %c0_16 = arith.constant 0 : index
    %48 = vector.load %arg8[%c0_15, %c0_16] : memref<1x128xf32, #tpu.memory_space<vmem>>, vector<1x128xf32>
    tpu.vector_store %arg8[%c0_15, %c0_16], %47 {strides = array<i32>} : memref<1x128xf32, #tpu.memory_space<vmem>>, vector<1x128xf32>,
    return
  }
  func.func @transform_0(%arg0: i32, %arg1: memref<6xf32, #tpu.memory_space<smem>>) -> (i32, i32) {
    %c0_i32 = arith.constant 0 : i32
    %c0_i32_0 = arith.constant 0 : i32
    return %arg0, %c0_i32 : i32, i32
  }
  func.func @transform_1(%arg0: i32, %arg1: memref<6xf32, #tpu.memory_space<smem>>) -> (i32, i32) {
    %c0_i32 = arith.constant 0 : i32
    %c0_i32_0 = arith.constant 0 : i32
    return %arg0, %c0_i32 : i32, i32
  }
  func.func @transform_2(%arg0: i32, %arg1: memref<6xf32, #tpu.memory_space<smem>>) -> (i32, i32) {
    %c0_i32 = arith.constant 0 : i32
    %c0_i32_0 = arith.constant 0 : i32
    return %arg0, %c0_i32 : i32, i32
  }
  func.func @transform_3(%arg0: i32, %arg1: memref<6xf32, #tpu.memory_space<smem>>) -> (i32, i32) {
    %c0_i32 = arith.constant 0 : i32
    %c0_i32_0 = arith.constant 0 : i32
    return %arg0, %c0_i32 : i32, i32
  }
  func.func @transform_4(%arg0: i32, %arg1: memref<6xf32, #tpu.memory_space<smem>>) -> (i32, i32) {
    %c0_i32 = arith.constant 0 : i32
    %c0_i32_0 = arith.constant 0 : i32
    return %arg0, %c0_i32 : i32, i32
  }
  func.func @transform_5(%arg0: i32, %arg1: memref<6xf32, #tpu.memory_space<smem>>) -> (i32, i32) {
    %c0_i32 = arith.constant 0 : i32
    %c0_i32_0 = arith.constant 0 : i32
    return %arg0, %c0_i32 : i32, i32
  }
  func.func @transform_6(%arg0: i32, %arg1: memref<6xf32, #tpu.memory_space<smem>>) -> (i32, i32) {
    %c0_i32 = arith.constant 0 : i32
    %c0_i32_0 = arith.constant 0 : i32
    return %arg0, %c0_i32 : i32, i32
  }
}

</mosaic_0001>

<llo_original>
// kernel: tpu_custom_call.1
$region0: #{tpu_custom_call.1}
  #allocation0 [shape = 'u32[]', space=smem, size = 0x4, offset = 0x4, fixed_abs, tag = 'smem constant byte address 0x4 - core index']
  #allocation1 [shape = 'u32[72,128]{1,0:T(1,128)}', space=vmem, size = 0x9000, scoped, tag = 'internal scratch']
  #allocation2 [shape = 's32[1]{0}', space=sflag, size = 0x4, scoped, tag = 'scoped memory for tpu_custom_call.1']
  #allocation3 [shape = 'u8[512]{0}', space=smem, size = 0x200, scoped, tag = 'prefetched SMEM operand 0']
  %s0 = inlined_call_operand.hbm [shape: f32[6], index: 0, kind: input, shape index: {}]
  %s1 = inlined_call_operand.hbm [shape: f32[1,128], index: 1, kind: input, shape index: {}]
  %s2 = inlined_call_operand.vmem [shape: f32[1,128], index: 2, kind: input, shape index: {}]
  %s3 = inlined_call_operand.vmem [shape: f32[1,128], index: 3, kind: input, shape index: {}]
  %s4 = inlined_call_operand.vmem [shape: f32[1,128], index: 4, kind: input, shape index: {}]
  %s5 = inlined_call_operand.vmem [shape: f32[1,128], index: 5, kind: input, shape index: {}]
  %s6 = inlined_call_operand.vmem [shape: f32[1,128], index: 6, kind: input, shape index: {}]
  %s7 = inlined_call_operand.hbm [shape: f32[1,128], index: 7, kind: output, shape index: {}]
  %s8 = sld [smem:[#allocation0]]
  $region38: #{tpu_custom_call.1} parent=0
    _
  %s10 = ssub.s32 1, %s8
  %s11 = scalar_select 0, %s10, %s8
  %s13 = sshll.u32 %s0, 4
  %s14 = int_to_ptr.hbm [resolvable:$true] %s13
  %16 = dma.hbm_to_smem %s14, 16, [#allocation3], [#allocation2]
  %18 = dma.done [#allocation2], 16
  %19 = sfence
  $region1: #{tpu_custom_call.1} parent=0
    #allocation4 [shape = 'u8[512]{0}', space=vmem, size = 0x400, scoped, tag = 'input window, operand 1, single buffered']
    #allocation5 [shape = 's32[1]{0}', space=sflag, size = 0x4, scoped, tag = 'scoped memory for tpu_custom_call.1']
    #allocation6 [shape = 's32[1]{0}', space=sflag, size = 0x4, scoped, tag = 'scoped memory for tpu_custom_call.1']
    #allocation7 [shape = 'u8[512]{0}', space=vmem, size = 0x400, scoped, tag = 'output window, operand 0, single buffered']
    %20 = vsyncpa [#allocation5], 0
    %21 = vsyncpa [#allocation6], 0
    // Predicated region
    $region2: #{tpu_custom_call.1} parent=1 // pred_check
      _
    $region3: #{tpu_custom_call.1} parent=1 // pred_check_branch
      %23 = sbr.rel (0) target = $region5
    $region4: #{tpu_custom_call.1} parent=1 // pred_region
      %25 = vsyncadd [#allocation5], 0
      %s27 = sshll.u32 %s1, 4
      %s28 = int_to_ptr.hbm [resolvable:$true] %s27
      %s29 = sshll.u32 [#allocation4], 4
      %s30 = int_to_ptr.vmem [resolvable:$true] %s29
      %32 = dma.hbm_to_vmem [thread:$0]  %s28, 16, %s30, [#allocation5]
    $region5: #{tpu_custom_call.1} parent=1 // pred_fallthru
      _
    // Predicated region
    $region6: #{tpu_custom_call.1} parent=1 // pred_check
      _
    $region7: #{tpu_custom_call.1} parent=1 // pred_check_branch
      %34 = sbr.rel (0) target = $region9
    $region8: #{tpu_custom_call.1} parent=1 // pred_region
      _
    $region9: #{tpu_custom_call.1} parent=1 // pred_fallthru
      _
    // Predicated region
    $region10: #{tpu_custom_call.1} parent=1 // pred_check
      _
    $region11: #{tpu_custom_call.1} parent=1 // pred_check_branch
      %36 = sbr.rel (0) target = $region13
    $region12: #{tpu_custom_call.1} parent=1 // pred_region
      _
    $region13: #{tpu_custom_call.1} parent=1 // pred_fallthru
      _
    // Predicated region
    $region14: #{tpu_custom_call.1} parent=1 // pred_check
      _
    $region15: #{tpu_custom_call.1} parent=1 // pred_check_branch
      %38 = sbr.rel (0) target = $region17
    $region16: #{tpu_custom_call.1} parent=1 // pred_region
      _
    $region17: #{tpu_custom_call.1} parent=1 // pred_fallthru
      _
    // Predicated region
    $region18: #{tpu_custom_call.1} parent=1 // pred_check
      _
    $region19: #{tpu_custom_call.1} parent=1 // pred_check_branch
      %40 = sbr.rel (0) target = $region21
    $region20: #{tpu_custom_call.1} parent=1 // pred_region
      _
    $region21: #{tpu_custom_call.1} parent=1 // pred_fallthru
      _
    // Predicated region
    $region22: #{tpu_custom_call.1} parent=1 // pred_check
      _
    $region23: #{tpu_custom_call.1} parent=1 // pred_check_branch
      %42 = sbr.rel (0) target = $region25
    $region24: #{tpu_custom_call.1} parent=1 // pred_region
      _
    $region25: #{tpu_custom_call.1} parent=1 // pred_fallthru
      _
    // Predicated region
    $region26: #{tpu_custom_call.1} parent=1 // pred_check
      _
    $region27: #{tpu_custom_call.1} parent=1 // pred_check_branch
      %44 = sbr.rel (0) target = $region29
    $region28: #{tpu_custom_call.1} parent=1 // pred_region
      %46 = dma.done [#allocation5], 16
    $region29: #{tpu_custom_call.1} parent=1 // pred_fallthru
      _
    %v47 = vld [vmem:[#allocation4] sm:$0x1]
    %v48 = vld [vmem:[%s2] sm:$0x1]
    %v49 = vld [vmem:[%s3] sm:$0x1]
    %v50 = vld [vmem:[%s4] sm:$0x1]
    %v51 = vld [vmem:[%s5] sm:$0x1]
    %v52 = vld [vmem:[%s6] sm:$0x1]
    %v53 = vmin.f32 %v47, %v49
    %v54 = vmin.f32 %v47, %v50
    %v55 = vmin.f32 %v47, %v51
    %v56 = vmin.f32 %v47, %v52
    %v57 = vmin.f32 %v48, %v49
    %v58 = vmin.f32 %v57, %v50
    %v59 = vmax.f32 %v53, %v54
    %v60 = vmax.f32 %v55, %v56
    %v61 = vmax.f32 %v59, %v60
    %v62 = vmax.f32 %v61, %v58
    %v63 = vsub.f32 1.0, %v62
    %s64 = sld [smem:[#allocation3]]
    %s65 = sld [smem:[#allocation3 + $0x1]]
    %s66 = sld [smem:[#allocation3 + $0x2]]
    %s67 = sld [smem:[#allocation3 + $0x3]]
    %s68 = sld [smem:[#allocation3 + $0x4]]
    %s69 = sld [smem:[#allocation3 + $0x5]]
    %v70 = vstv %s64
    %v71 = vmul.f32 %v70, %v53
    %v72 = vstv %s65
    %v73 = vmul.f32 %v72, %v54
    %v74 = vadd.f32 %v71, %v73
    %v75 = vstv %s66
    %v76 = vmul.f32 %v75, %v55
    %v77 = vadd.f32 %v74, %v76
    %s78 = smul.f32 %s67, 0.5
    %v79 = vstv %s78
    %v80 = vmul.f32 %v79, %v56
    %s81 = smul.f32 %s68, 0.5
    %v82 = vstv %s81
    %v83 = vmul.f32 %v82, %v58
    %v84 = vadd.f32 %v77, %v80
    %v85 = vadd.f32 %v84, %v83
    %v86 = vadd.f32 %v85, %v80
    %v87 = vadd.f32 %v86, %v83
    %v88 = vstv %s69
    %v89 = vmul.f32 %v88, %v63
    %v90 = vadd.f32 %v87, %v89
    %v91 = vadd.f32 %v90, 1e-10
    %v92 = vrcp.pop %v91
    %v93 = vmul.f32 %v91, %v92
    %v94 = vsub.f32 1.0, %v93
    %v95 = vmul.f32 %v92, %v94
    %v96 = vadd.f32 %v92, %v95
    %vm97 = vweird.f32 %v91
    %vm98 = vweird.f32 %v92
    %vm99 = vmor %vm97, %vm98
    %v100 = vsel %vm99, %v92, %v96
    %v101 = vand.u32 2147483647, %v91
    %vm102 = vcmp.eq.f32.partialorder %v101, 8.507059e+37
    %v103 = vand.u32 %v91, 2147483648
    %v104 = vor.u32 1.1754944e-38, %v103
    %v105 = vsel %vm102, %v104, %v100
    %v106 = vmul.f32 %v85, %v105
    %107 = vst [vmem:[#allocation7] sm:$0x1] %v106
    // Predicated region
    $region30: #{tpu_custom_call.1} parent=1 // pred_check
      _
    $region31: #{tpu_custom_call.1} parent=1 // pred_check_branch
      %109 = sbr.rel (0) target = $region33
    $region32: #{tpu_custom_call.1} parent=1 // pred_region
      %111 = vsyncadd [#allocation6], 0
      %s113 = sshll.u32 [#allocation7], 4
      %s114 = int_to_ptr.vmem [resolvable:$true] %s113
      %s115 = sshll.u32 %s7, 4
      %s116 = int_to_ptr.hbm [resolvable:$true] %s115
      %118 = dma.vmem_to_hbm [thread:$0]  %s114, 16, %s116, [#allocation6]
    $region33: #{tpu_custom_call.1} parent=1 // pred_fallthru
      _
    // Predicated region
    $region34: #{tpu_custom_call.1} parent=1 // pred_check
      _
    $region35: #{tpu_custom_call.1} parent=1 // pred_check_branch
      %120 = sbr.rel (0) target = $region37
    $region36: #{tpu_custom_call.1} parent=1 // pred_region
      %122 = dma.done [#allocation6], 16
    $region37: #{tpu_custom_call.1} parent=1 // pred_fallthru
      _
    %123 = vsyncpa [#allocation5], 1
    %124 = vsyncpa [#allocation6], 1

</llo_original>
